<compile_context>
chip_gen: v6e
topology: v6e:2x2x1
jax: 0.10.0
libtpu: 0.0.40
codegen_flags: <defaults>
</compile_context>

<pallas_src>
import functools

import jax
import jax.numpy as jnp
from jax.experimental import pallas as pl
from jax.experimental.pallas import tpu as pltpu

_EPS = 1e-7


def _giou_sum_kernel(pred_ref, text_ref, out_ref, acc_ref, *,
                     n_queries, tile_n, tiles_per_split):
    # pred_ref: f32[4, B, tile_n]  coordinate-major block of predicted boxes
    # text_ref: f32[4, B, 1]       one text box per batch (resident, tiny)
    # out_ref : f32[1, 8, 128]     per-split partial sum (broadcast-filled)
    # acc_ref : f32[B, tile_n]     VMEM accumulator, persists across tiles
    s = pl.program_id(0)   # megacore split      ("parallel")
    i = pl.program_id(1)   # tile within split   ("arbitrary" / reduction)

    @pl.when(i == 0)
    def _():
        acc_ref[...] = jnp.zeros_like(acc_ref)

    px1 = pred_ref[0]
    py1 = pred_ref[1]
    px2 = pred_ref[2]
    py2 = pred_ref[3]                      # [B, tile_n]
    tx1 = text_ref[0]
    ty1 = text_ref[1]
    tx2 = text_ref[2]
    ty2 = text_ref[3]                      # [B, 1] -> lane-broadcast below

    # --- box_iou ---
    ix1 = jnp.maximum(px1, tx1)
    iy1 = jnp.maximum(py1, ty1)
    ix2 = jnp.minimum(px2, tx2)
    iy2 = jnp.minimum(py2, ty2)
    inter = jnp.maximum(ix2 - ix1, 0.0) * jnp.maximum(iy2 - iy1, 0.0)

    area_p = (px2 - px1) * (py2 - py1)     # [B, tile_n]
    area_t = (tx2 - tx1) * (ty2 - ty1)     # [B, 1]  (one value per batch)
    union = area_p + area_t - inter
    # TODO(synk): pl.reciprocal(x, approx=True) would move the two divides to
    # the idle EUP slot; kept exact to match the PyTorch module's numerics.
    iou = inter / (union + _EPS)

    # --- generalized_box_iou ---
    ex1 = jnp.minimum(px1, tx1)
    ey1 = jnp.minimum(py1, ty1)
    ex2 = jnp.maximum(px2, tx2)
    ey2 = jnp.maximum(py2, ty2)
    enclose = jnp.maximum(ex2 - ex1, 0.0) * jnp.maximum(ey2 - ey1, 0.0)
    giou = iou - (enclose - union) / (enclose + _EPS)

    # Mask padded lanes (ragged last tile) and clamped duplicate tiles.
    t_logical = s * tiles_per_split + i
    lane = jax.lax.broadcasted_iota(jnp.int32, giou.shape, 1)
    valid = (t_logical * tile_n + lane) < n_queries
    acc_ref[...] += jnp.where(valid, giou, 0.0)

    @pl.when(i == tiles_per_split - 1)
    def _():
        out_ref[...] = jnp.full(out_ref.shape, jnp.sum(acc_ref[...]),
                                dtype=out_ref.dtype)


def position_matching_loss(pred_boxes, text_boxes, *,
                           target_block_bytes=8 << 20, n_splits=2):
    """pred_boxes: [B, N, 4], text_boxes: [B, 4]  ->  scalar f32 loss."""
    B, N, C = pred_boxes.shape
    assert C == 4 and text_boxes.shape == (B, 4)

    # TODO(synk): this transpose is a separate XLA relayout over the pred
    # data; ideally the producer emits coordinate-major [4, B, N] directly.
    pred_cm = jnp.transpose(pred_boxes.astype(jnp.float32), (2, 0, 1))            # [4, B, N]
    text_cm = jnp.transpose(text_boxes.astype(jnp.float32), (1, 0))[:, :, None]   # [4, B, 1]

    # Tile the query axis: ~target_block_bytes per pred block (4 coords * f32).
    lanes = max(128, (int(target_block_bytes) // (16 * B)) // 128 * 128)
    tile_n = int(min(lanes, pl.cdiv(N, 128) * 128))
    num_tiles = int(pl.cdiv(N, tile_n))
    n_splits_eff = int(max(1, min(n_splits, num_tiles)))
    tiles_per_split = int(pl.cdiv(num_tiles, n_splits_eff))

    pred_block_bytes = 16 * B * tile_n
    acc_bytes = 4 * B * tile_n
    vmem_limit = int(min(100 << 20,
                         max(32 << 20, 2 * pred_block_bytes + acc_bytes + (2 << 20))))

    kernel = functools.partial(_giou_sum_kernel, n_queries=N, tile_n=tile_n,
                               tiles_per_split=tiles_per_split)

    def pred_map(s, i):
        # Clamp so the last split's padding tiles never issue an OOB DMA;
        # those tiles are fully masked out inside the kernel.
        return (0, 0, jnp.minimum(s * tiles_per_split + i, num_tiles - 1))

    partials = pl.pallas_call(
        kernel,
        out_shape=jax.ShapeDtypeStruct((n_splits_eff, 8, 128), jnp.float32),
        grid_spec=pltpu.PrefetchScalarGridSpec(
            num_scalar_prefetch=0,
            grid=(n_splits_eff, tiles_per_split),
            in_specs=[
                pl.BlockSpec((4, B, tile_n), pred_map),
                pl.BlockSpec((4, B, 1), lambda s, i: (0, 0, 0)),   # resident, tiny
            ],
            out_specs=pl.BlockSpec((1, 8, 128), lambda s, i: (s, 0, 0)),
            scratch_shapes=[pltpu.VMEM((B, tile_n), jnp.float32)],
        ),
        compiler_params=pltpu.CompilerParams(
            dimension_semantics=("parallel", "arbitrary"),
            vmem_limit_bytes=vmem_limit,
        ),
    )(pred_cm, text_cm)

    giou_sum = jnp.sum(partials[:, 0, 0])
    return 1.0 - giou_sum / (B * N)


def _reference_loss(pred_boxes, text_boxes):
    """Pure-JAX reference mirroring the PyTorch module."""
    B, N, _ = pred_boxes.shape
    t = jnp.broadcast_to(text_boxes[:, None, :], (B, N, 4)).astype(jnp.float32)
    p = pred_boxes.astype(jnp.float32)
    x1 = jnp.maximum(p[..., 0], t[..., 0])
    y1 = jnp.maximum(p[..., 1], t[..., 1])
    x2 = jnp.minimum(p[..., 2], t[..., 2])
    y2 = jnp.minimum(p[..., 3], t[..., 3])
    inter = jnp.maximum(x2 - x1, 0.0) * jnp.maximum(y2 - y1, 0.0)
    area1 = (p[..., 2] - p[..., 0]) * (p[..., 3] - p[..., 1])
    area2 = (t[..., 2] - t[..., 0]) * (t[..., 3] - t[..., 1])
    union = area1 + area2 - inter
    iou = inter / (union + _EPS)
    ex1 = jnp.minimum(p[..., 0], t[..., 0])
    ey1 = jnp.minimum(p[..., 1], t[..., 1])
    ex2 = jnp.maximum(p[..., 2], t[..., 2])
    ey2 = jnp.maximum(p[..., 3], t[..., 3])
    enc = jnp.maximum(ex2 - ex1, 0.0) * jnp.maximum(ey2 - ey1, 0.0)
    giou = iou - (enc - union) / (enc + _EPS)
    return jnp.mean(1.0 - giou)


def _make_inputs(key, B, N):
    k1, k2, k3, k4 = jax.random.split(key, 4)
    # Well-formed boxes: x_min < x_max, y_min < y_max, coords in [0, 64].
    pred_min = jax.random.uniform(k1, (B, N, 2), jnp.float32, 0.0, 48.0)
    pred_wh = jax.random.uniform(k2, (B, N, 2), jnp.float32, 2.0, 16.0)
    pred_boxes = jnp.concatenate([pred_min, pred_min + pred_wh], axis=-1)   # [B, N, 4]
    text_min = jax.random.uniform(k3, (B, 2), jnp.float32, 0.0, 48.0)
    text_wh = jax.random.uniform(k4, (B, 2), jnp.float32, 2.0, 16.0)
    text_boxes = jnp.concatenate([text_min, text_min + text_wh], axis=-1)   # [B, 4]
    return pred_boxes, text_boxes


if __name__ == "__main__":
    # Config values (delta_r, delta_theta, pixel_size) are unused by forward().
    key = jax.random.PRNGKey(0)
    k_small, k_big = jax.random.split(key)

    # Primary small-shape check: B=2, N=8 queries (single tile).
    pred_s, text_s = _make_inputs(k_small, B=2, N=8)
    loss_fn = jax.jit(position_matching_loss)
    loss_s = jax.block_until_ready(loss_fn(pred_s, text_s))
    ref_s = jax.block_until_ready(_reference_loss(pred_s, text_s))
    assert jnp.allclose(loss_s, ref_s, rtol=1e-5, atol=1e-5), (loss_s, ref_s)

    # Secondary check exercising the multi-tile / ragged / megacore-split path
    # (tile_n forced to 128 -> 3 tiles, 2 splits, one clamped+masked tile).
    pred_b, text_b = _make_inputs(k_big, B=2, N=300)
    loss_fn_tiled = jax.jit(
        functools.partial(position_matching_loss, target_block_bytes=4096))
    loss_b = jax.block_until_ready(loss_fn_tiled(pred_b, text_b))
    ref_b = jax.block_until_ready(_reference_loss(pred_b, text_b))
    assert jnp.allclose(loss_b, ref_b, rtol=1e-5, atol=1e-5), (loss_b, ref_b)

    print("KERNEL_OK")
</pallas_src>

<mosaic_0001>
module attributes {stable_mosaic.version = 11 : i64} {
  func.func @_giou_sum_kernel(%arg0: i32, %arg1: i32, %arg2: memref<4x2x128xf32, #tpu.memory_space<vmem>>, %arg3: memref<4x2x1xf32, #tpu.memory_space<vmem>>, %arg4: memref<1x8x128xf32, #tpu.memory_space<vmem>>, %arg5: memref<2x128xf32, #tpu.memory_space<vmem>>) attributes {dimension_semantics = [#tpu.dimension_semantics<parallel>, #tpu.dimension_semantics<arbitrary>], iteration_bounds = array<i64: 1, 1>, scalar_prefetch = 0 : i64, scratch_operands = 1 : i64, tpu.core_type = #tpu.core_type<tc>, window_params = [{transform_indices = @transform_0, window_bounds = array<i64: 4, 2, 128>}, {pipeline_mode = #tpu.pipeline_mode<synchronous>, transform_indices = @transform_1, window_bounds = array<i64: 4, 2, 1>}, {transform_indices = @transform_2, window_bounds = array<i64: 1, 8, 128>}]} {
    %c0_i32 = arith.constant 0 : i32
    %0 = arith.cmpi eq, %arg1, %c0_i32 : i32
    %1 = arith.extui %0 : i1 to i32
    %c0_i32_0 = arith.constant 0 : i32
    %2 = arith.cmpi ne, %1, %c0_i32_0 : i32
    scf.if %2 {
      %cst_33 = arith.constant 0.000000e+00 : f32
      %82 = vector.broadcast %cst_33 : f32 to vector<2x128xf32>
      %c0_34 = arith.constant 0 : index
      %c0_35 = arith.constant 0 : index
      %83 = vector.load %arg5[%c0_34, %c0_35] : memref<2x128xf32, #tpu.memory_space<vmem>>, vector<2x128xf32>
      tpu.vector_store %arg5[%c0_34, %c0_35], %82 {strides = array<i32>} : memref<2x128xf32, #tpu.memory_space<vmem>>, vector<2x128xf32>,
    } else {
    }
    %c0 = arith.constant 0 : index
    %c0_1 = arith.constant 0 : index
    %c0_2 = arith.constant 0 : index
    %3 = vector.load %arg2[%c0, %c0_1, %c0_2] : memref<4x2x128xf32, #tpu.memory_space<vmem>>, vector<1x2x128xf32>
    %4 = vector.shape_cast %3 : vector<1x2x128xf32> to vector<2x128xf32>
    %c1 = arith.constant 1 : index
    %c0_3 = arith.constant 0 : index
    %c0_4 = arith.constant 0 : index
    %5 = vector.load %arg2[%c1, %c0_3, %c0_4] : memref<4x2x128xf32, #tpu.memory_space<vmem>>, vector<1x2x128xf32>
    %6 = vector.shape_cast %5 : vector<1x2x128xf32> to vector<2x128xf32>
    %c2 = arith.constant 2 : index
    %c0_5 = arith.constant 0 : index
    %c0_6 = arith.constant 0 : index
    %7 = vector.load %arg2[%c2, %c0_5, %c0_6] : memref<4x2x128xf32, #tpu.memory_space<vmem>>, vector<1x2x128xf32>
    %8 = vector.shape_cast %7 : vector<1x2x128xf32> to vector<2x128xf32>
    %c3 = arith.constant 3 : index
    %c0_7 = arith.constant 0 : index
    %c0_8 = arith.constant 0 : index
    %9 = vector.load %arg2[%c3, %c0_7, %c0_8] : memref<4x2x128xf32, #tpu.memory_space<vmem>>, vector<1x2x128xf32>
    %10 = vector.shape_cast %9 : vector<1x2x128xf32> to vector<2x128xf32>
    %c0_9 = arith.constant 0 : index
    %c0_10 = arith.constant 0 : index
    %c0_11 = arith.constant 0 : index
    %11 = vector.load %arg3[%c0_9, %c0_10, %c0_11] : memref<4x2x1xf32, #tpu.memory_space<vmem>>, vector<1x2x1xf32>
    %12 = vector.shape_cast %11 : vector<1x2x1xf32> to vector<2x1xf32>
    %c1_12 = arith.constant 1 : index
    %c0_13 = arith.constant 0 : index
    %c0_14 = arith.constant 0 : index
    %13 = vector.load %arg3[%c1_12, %c0_13, %c0_14] : memref<4x2x1xf32, #tpu.memory_space<vmem>>, vector<1x2x1xf32>
    %14 = vector.shape_cast %13 : vector<1x2x1xf32> to vector<2x1xf32>
    %c2_15 = arith.constant 2 : index
    %c0_16 = arith.constant 0 : index
    %c0_17 = arith.constant 0 : index
    %15 = vector.load %arg3[%c2_15, %c0_16, %c0_17] : memref<4x2x1xf32, #tpu.memory_space<vmem>>, vector<1x2x1xf32>
    %16 = vector.shape_cast %15 : vector<1x2x1xf32> to vector<2x1xf32>
    %c3_18 = arith.constant 3 : index
    %c0_19 = arith.constant 0 : index
    %c0_20 = arith.constant 0 : index
    %17 = vector.load %arg3[%c3_18, %c0_19, %c0_20] : memref<4x2x1xf32, #tpu.memory_space<vmem>>, vector<1x2x1xf32>
    %18 = vector.shape_cast %17 : vector<1x2x1xf32> to vector<2x1xf32>
    %19 = vector.broadcast %12 : vector<2x1xf32> to vector<2x128xf32>
    %20 = arith.maximumf %4, %19 : vector<2x128xf32>
    %21 = vector.broadcast %14 : vector<2x1xf32> to vector<2x128xf32>
    %22 = arith.maximumf %6, %21 : vector<2x128xf32>
    %23 = vector.broadcast %16 : vector<2x1xf32> to vector<2x128xf32>
    %24 = arith.minimumf %8, %23 : vector<2x128xf32>
    %25 = vector.broadcast %18 : vector<2x1xf32> to vector<2x128xf32>
    %26 = arith.minimumf %10, %25 : vector<2x128xf32>
    %27 = arith.subf %24, %20 : vector<2x128xf32>
    %cst = arith.constant 0.000000e+00 : f32
    %28 = vector.broadcast %cst : f32 to vector<2x128xf32>
    %29 = arith.maximumf %27, %28 : vector<2x128xf32>
    %30 = arith.subf %26, %22 : vector<2x128xf32>
    %cst_21 = arith.constant 0.000000e+00 : f32
    %31 = vector.broadcast %cst_21 : f32 to vector<2x128xf32>
    %32 = arith.maximumf %30, %31 : vector<2x128xf32>
    %33 = arith.mulf %29, %32 : vector<2x128xf32>
    %34 = arith.subf %8, %4 : vector<2x128xf32>
    %35 = arith.subf %10, %6 : vector<2x128xf32>
    %36 = arith.mulf %34, %35 : vector<2x128xf32>
    %37 = arith.subf %16, %12 : vector<2x1xf32>
    %38 = arith.subf %18, %14 : vector<2x1xf32>
    %39 = arith.mulf %37, %38 : vector<2x1xf32>
    %40 = vector.broadcast %39 : vector<2x1xf32> to vector<2x128xf32>
    %41 = arith.addf %36, %40 : vector<2x128xf32>
    %42 = arith.subf %41, %33 : vector<2x128xf32>
    %cst_22 = arith.constant 1.000000e-07 : f32
    %43 = vector.broadcast %cst_22 : f32 to vector<2x128xf32>
    %44 = arith.addf %42, %43 : vector<2x128xf32>
    %45 = arith.divf %33, %44 : vector<2x128xf32>
    %46 = vector.broadcast %12 : vector<2x1xf32> to vector<2x128xf32>
    %47 = arith.minimumf %4, %46 : vector<2x128xf32>
    %48 = vector.broadcast %14 : vector<2x1xf32> to vector<2x128xf32>
    %49 = arith.minimumf %6, %48 : vector<2x128xf32>
    %50 = vector.broadcast %16 : vector<2x1xf32> to vector<2x128xf32>
    %51 = arith.maximumf %8, %50 : vector<2x128xf32>
    %52 = vector.broadcast %18 : vector<2x1xf32> to vector<2x128xf32>
    %53 = arith.maximumf %10, %52 : vector<2x128xf32>
    %54 = arith.subf %51, %47 : vector<2x128xf32>
    %cst_23 = arith.constant 0.000000e+00 : f32
    %55 = vector.broadcast %cst_23 : f32 to vector<2x128xf32>
    %56 = arith.maximumf %54, %55 : vector<2x128xf32>
    %57 = arith.subf %53, %49 : vector<2x128xf32>
    %cst_24 = arith.constant 0.000000e+00 : f32
    %58 = vector.broadcast %cst_24 : f32 to vector<2x128xf32>
    %59 = arith.maximumf %57, %58 : vector<2x128xf32>
    %60 = arith.mulf %56, %59 : vector<2x128xf32>
    %61 = arith.subf %60, %42 : vector<2x128xf32>
    %cst_25 = arith.constant 1.000000e-07 : f32
    %62 = vector.broadcast %cst_25 : f32 to vector<2x128xf32>
    %63 = arith.addf %60, %62 : vector<2x128xf32>
    %64 = arith.divf %61, %63 : vector<2x128xf32>
    %65 = arith.subf %45, %64 : vector<2x128xf32>
    %c1_i32 = arith.constant 1 : i32
    %66 = arith.muli %arg0, %c1_i32 : i32
    %67 = arith.addi %66, %arg1 : i32
    %68 = tpu.iota {dimensions = array<i32: 1>} : vector<2x128xi32>
    %c128_i32 = arith.constant 128 : i32
    %69 = arith.muli %67, %c128_i32 : i32
    %70 = vector.broadcast %69 : i32 to vector<2x128xi32>
    %71 = arith.addi %70, %68 : vector<2x128xi32>
    %c8_i32 = arith.constant 8 : i32
    %72 = vector.broadcast %c8_i32 : i32 to vector<2x128xi32>
    %73 = arith.cmpi slt, %71, %72 : vector<2x128xi32>
    %c0_26 = arith.constant 0 : index
    %c0_27 = arith.constant 0 : index
    %74 = vector.load %arg5[%c0_26, %c0_27] : memref<2x128xf32, #tpu.memory_space<vmem>>, vector<2x128xf32>
    %cst_28 = arith.constant 0.000000e+00 : f32
    %75 = vector.broadcast %cst_28 : f32 to vector<2x128xf32>
    %76 = arith.select %73, %65, %75 : vector<2x128xi1>, vector<2x128xf32>
    %77 = arith.addf %74, %76 : vector<2x128xf32>
    %c0_29 = arith.constant 0 : index
    %c0_30 = arith.constant 0 : index
    %78 = vector.load %arg5[%c0_29, %c0_30] : memref<2x128xf32, #tpu.memory_space<vmem>>, vector<2x128xf32>
    tpu.vector_store %arg5[%c0_29, %c0_30], %77 {strides = array<i32>} : memref<2x128xf32, #tpu.memory_space<vmem>>, vector<2x128xf32>,
    %c0_i32_31 = arith.constant 0 : i32
    %79 = arith.cmpi eq, %arg1, %c0_i32_31 : i32
    %80 = arith.extui %79 : i1 to i32
    %c0_i32_32 = arith.constant 0 : i32
    %81 = arith.cmpi ne, %80, %c0_i32_32 : i32
    scf.if %81 {
      %c0_33 = arith.constant 0 : index
      %c0_34 = arith.constant 0 : index
      %82 = vector.load %arg5[%c0_33, %c0_34] : memref<2x128xf32, #tpu.memory_space<vmem>>, vector<2x128xf32>
      %83 = vector.shape_cast %82 : vector<2x128xf32> to vector<1x2x128xf32>
      %cst_35 = arith.constant dense<0.000000e+00> : vector<1xf32>
      %84 = vector.multi_reduction <add>, %83, %cst_35 [1, 2] : vector<1x2x128xf32> to vector<1xf32>
      %85 = vector.shape_cast %84 : vector<1xf32> to vector<1x1x1xf32>
      %86 = vector.extract %85[0, 0, 0] : f32 from vector<1x1x1xf32>
      %87 = vector.broadcast %86 : f32 to vector<1x8x128xf32>
      %c0_36 = arith.constant 0 : index
      %c0_37 = arith.constant 0 : index
      %c0_38 = arith.constant 0 : index
      %88 = vector.load %arg4[%c0_36, %c0_37, %c0_38] : memref<1x8x128xf32, #tpu.memory_space<vmem>>, vector<1x8x128xf32>
      tpu.vector_store %arg4[%c0_36, %c0_37, %c0_38], %87 {strides = array<i32>} : memref<1x8x128xf32, #tpu.memory_space<vmem>>, vector<1x8x128xf32>,
    } else {
    }
    return
  }
  func.func @transform_0(%arg0: i32, %arg1: i32) -> (i32, i32, i32) {
    %c1_i32 = arith.constant 1 : i32
    %0 = arith.muli %arg0, %c1_i32 : i32
    %1 = arith.addi %0, %arg1 : i32
    %c0_i32 = arith.constant 0 : i32
    %2 = arith.minsi %1, %c0_i32 : i32
    %c0_i32_0 = arith.constant 0 : i32
    %c0_i32_1 = arith.constant 0 : i32
    %c0_i32_2 = arith.constant 0 : i32
    return %c0_i32_0, %c0_i32_1, %2 : i32, i32, i32
  }
  func.func @transform_1(%arg0: i32, %arg1: i32) -> (i32, i32, i32) {
    %c0_i32 = arith.constant 0 : i32
    %c0_i32_0 = arith.constant 0 : i32
    %c0_i32_1 = arith.constant 0 : i32
    %c0_i32_2 = arith.constant 0 : i32
    return %c0_i32, %c0_i32_0, %c0_i32_1 : i32, i32, i32
  }
  func.func @transform_2(%arg0: i32, %arg1: i32) -> (i32, i32, i32) {
    %c0_i32 = arith.constant 0 : i32
    %c0_i32_0 = arith.constant 0 : i32
    %c0_i32_1 = arith.constant 0 : i32
    return %arg0, %c0_i32, %c0_i32_0 : i32, i32, i32
  }
}

</mosaic_0001>

<llo_original>
// kernel: position_matching_loss.1
$region0: #{position_matching_loss.1}
  #allocation0 [shape = 'u32[]', space=smem, size = 0x4, offset = 0x4, fixed_abs, tag = 'smem constant byte address 0x4 - core index']
  #allocation1 [shape = 'u32[144,128]{1,0:T(1,128)}', space=vmem, size = 0x12000, scoped, tag = 'internal scratch']
  #allocation2 [shape = 'f32[2,128]{1,0:T(2,128)}', space=vmem, size = 0x400, scoped, tag = 'scratch operand']
  %s0 = inlined_call_operand.vmem [shape: f32[4,2,8], index: 0, kind: input, shape index: {}]
  %s1 = inlined_call_operand.vmem [shape: f32[4,2,1], index: 1, kind: input, shape index: {}]
  %s2 = inlined_call_operand.vmem [shape: f32[1,8,128], index: 2, kind: output, shape index: {}]
  %s3 = sld [smem:[#allocation0]]
  $region26: #{position_matching_loss.1} parent=0
    _
  %s5 = ssub.s32 1, %s3
  %s6 = scalar_select 0, %s5, %s3
  // Predicated region
  $region2: #{position_matching_loss.1} parent=0 // pred_check
    _
  $region3: #{position_matching_loss.1} parent=0 // pred_check_branch
    %8 = sbr.rel (0) target = $region5
  $region4: #{position_matching_loss.1} parent=0 // pred_region
    %s9 = sadd.s32 0, 0
    %p10 = scmp.lt.s32.totalorder %s9, 0
    %s11 = scalar_select %p10, %s9, 0
    %p12 = scmp.lt.s32.totalorder %s11, 0
    %s13 = scalar_select %p12, %s11, 0
    %s14 = smul.addr %s13, 2
    %s15 = scalar_lea.vmem %s0, %s14
    %s16 = sadd.s32 0, 0
    %p17 = scmp.lt.s32.totalorder %s16, 0
    %s18 = scalar_select %p17, %s16, 0
  $region5: #{position_matching_loss.1} parent=0 // pred_fallthru
    _
  // Predicated region
  $region6: #{position_matching_loss.1} parent=0 // pred_check
    _
  $region7: #{position_matching_loss.1} parent=0 // pred_check_branch
    %20 = sbr.rel (0) target = $region9
  $region8: #{position_matching_loss.1} parent=0 // pred_region
    _
  $region9: #{position_matching_loss.1} parent=0 // pred_fallthru
    _
  %s21 = sadd.s32 0, 0
  %p22 = scmp.lt.s32.totalorder %s21, 0
  %s23 = scalar_select %p22, %s21, 0
  %p24 = scmp.lt.s32.totalorder %s23, 0
  %s25 = scalar_select %p24, %s23, 0
  %s26 = smul.addr %s25, 2
  %s27 = scalar_lea.vmem %s0, %s26
  %s28 = sadd.s32 0, 0
  %p29 = scmp.lt.s32.totalorder %s28, 0
  %s30 = scalar_select %p29, %s28, 0
  %p31 = scmp.lt.s32.totalorder %s30, 0
  %s32 = scalar_select %p31, %s30, 0
  %s33 = smul.addr %s32, 2
  %s34 = scalar_lea.vmem %s0, %s33
  %s35 = sadd.s32 0, 0
  %p36 = scmp.lt.s32.totalorder %s35, 0
  %s37 = scalar_select %p36, %s35, 0
  %p38 = scmp.eq.s32.totalorder 0, 0
  // Predicated region
  $region10: #{position_matching_loss.1} parent=0 // pred_check
    %p39 = pneg %p38
  $region11: #{position_matching_loss.1} parent=0 // pred_check_branch
    %41 = sbr.rel (%p39) target = $region13
  $region12: #{position_matching_loss.1} parent=0 // pred_region
    %42 = vst [vmem:[#allocation2] sm:$0x3] 0.0
  $region13: #{position_matching_loss.1} parent=0 // pred_fallthru
    _
  %v43 = vld [vmem:[%s34] sm:$0x3]
  %s44 = scalar_lea.vmem %s34, 2
  %v45 = vld [vmem:[%s44] sm:$0x3]
  %s46 = scalar_lea.vmem %s34, 4
  %v47 = vld [vmem:[%s46] sm:$0x3]
  %s48 = scalar_lea.vmem %s34, 6
  %v49 = vld [vmem:[%s48] sm:$0x3]
  %v50 = vld [vmem:[%s1] sm:$0x3]
  %s51 = scalar_lea.vmem %s1, 2
  %v52 = vld [vmem:[%s51] sm:$0x3]
  %s53 = scalar_lea.vmem %s1, 4
  %v54 = vld [vmem:[%s53] sm:$0x3]
  %s55 = scalar_lea.vmem %s1, 6
  %v56 = vld [vmem:[%s55] sm:$0x3]
  %58 = vset.pattern.permute.xlu0 0
  %59 = vperm.xlu0 %58, %v50
  %v60 = vpop.permute.xlu0 %59
  %v62 = vmax.f32 %v43, %v60
  %64 = vset.pattern.permute.xlu0 0
  %65 = vperm.xlu0 %64, %v52
  %v66 = vpop.permute.xlu0 %65
  %v68 = vmax.f32 %v45, %v66
  %70 = vset.pattern.permute.xlu0 0
  %71 = vperm.xlu0 %70, %v54
  %v72 = vpop.permute.xlu0 %71
  %v74 = vmin.f32 %v47, %v72
  %76 = vset.pattern.permute.xlu0 0
  %77 = vperm.xlu0 %76, %v56
  %v78 = vpop.permute.xlu0 %77
  %v80 = vmin.f32 %v49, %v78
  %v81 = vsub.f32 %v74, %v62
  %v82 = vmax.f32 %v81, 0.0
  %v83 = vsub.f32 %v80, %v68
  %v84 = vmax.f32 %v83, 0.0
  %v85 = vmul.f32 %v82, %v84
  %v86 = vsub.f32 %v47, %v43
  %v87 = vsub.f32 %v49, %v45
  %v88 = vmul.f32 %v86, %v87
  %v89 = vsub.f32 %v54, %v50
  %v90 = vsub.f32 %v56, %v52
  %v91 = vmul.f32 %v89, %v90
  %93 = vset.pattern.permute.xlu0 0
  %94 = vperm.xlu0 %93, %v91
  %v95 = vpop.permute.xlu0 %94
  %v97 = vadd.f32 %v88, %v95
  %v98 = vsub.f32 %v97, %v85
  %v99 = vadd.f32 %v98, 1e-07
  %v100 = vrcp.pop %v99
  %v101 = vmul.f32 %v85, %v100
  %v102 = vmin.f32 %v43, %v60
  %v103 = vmin.f32 %v45, %v66
  %v104 = vmax.f32 %v47, %v72
  %v105 = vmax.f32 %v49, %v78
  %v106 = vsub.f32 %v104, %v102
  %v107 = vmax.f32 %v106, 0.0
  %v108 = vsub.f32 %v105, %v103
  %v109 = vmax.f32 %v108, 0.0
  %v110 = vmul.f32 %v107, %v109
  %v111 = vsub.f32 %v110, %v98
  %v112 = vadd.f32 %v110, 1e-07
  %v113 = vrcp.pop %v112
  %v114 = vmul.f32 %v111, %v113
  %v115 = vsub.f32 %v101, %v114
  %s116 = sadd.s32 0, 0
  %v117 = vlaneseq
  %v118 = vand.u32 %v117, 127
  %s119 = smul.u32 %s116, 128
  %v120 = vstv %s119
  %v121 = vadd.s32 %v120, %v118
  %vm122 = vcmp.lt.s32.totalorder %v121, 8
  %v123 = vld [vmem:[#allocation2] sm:$0x3]
  %v124 = vsel %vm122, %v115, 0.0
  %v125 = vadd.f32 %v123, %v124
  %126 = vst [vmem:[#allocation2] sm:$0x3] %v125
  // Predicated region
  $region14: #{position_matching_loss.1} parent=0 // pred_check
    %p127 = pneg %p38
  $region15: #{position_matching_loss.1} parent=0 // pred_check_branch
    %129 = sbr.rel (%p127) target = $region17
  $region16: #{position_matching_loss.1} parent=0 // pred_region
    %v130 = vld [vmem:[#allocation2] sm:$0x3]
    %vm131 = vcmask 1041408
    %v132 = vsel %vm131, %v130, 0.0
    %133 = vadd.xlane.f32.xlu0 %v132
    %v134 = vpop.xlane.xlu0 %133
    %v135 = vrot.slane %v134, 4
    %v136 = vadd.f32 %v134, %v135
    %v137 = vrot.slane %v136, 2
    %v138 = vadd.f32 %v136, %v137
    %v139 = vrot.slane %v138, 1
    %v140 = vadd.f32 %v138, %v139
    %s141 = vtos %v140
    %v142 = vstv %s141
    %143 = vst [vmem:[%s2] sm:$0xff] %v142
  $region17: #{position_matching_loss.1} parent=0 // pred_fallthru
    _
  // Predicated region
  $region18: #{position_matching_loss.1} parent=0 // pred_check
    _
  $region19: #{position_matching_loss.1} parent=0 // pred_check_branch
    %145 = sbr.rel (0) target = $region21
  $region20: #{position_matching_loss.1} parent=0 // pred_region
    _
  $region21: #{position_matching_loss.1} parent=0 // pred_fallthru
    _
  // Predicated region
  $region22: #{position_matching_loss.1} parent=0 // pred_check
    _
  $region23: #{position_matching_loss.1} parent=0 // pred_check_branch
    %147 = sbr.rel (0) target = $region25
  $region24: #{position_matching_loss.1} parent=0 // pred_region
    _
  $region25: #{position_matching_loss.1} parent=0 // pred_fallthru
    _

</llo_original>
